<compile_context>
chip_gen: v6e
topology: v6e:2x2x1
jax: 0.10.0
libtpu: 0.0.40
codegen_flags: <defaults>
</compile_context>

<pallas_src>
import functools
import math

import jax
import jax.numpy as jnp
from jax.experimental import pallas as pl
from jax.experimental.pallas import tpu as pltpu

# ----- small, module-consistent config -----
B = 2
TARGET_CHANNELS = 16      # in_channels == out_channels
Z_CHANNELS = 32
DIFF_SEQLEN = 64
WIDTH = 128               # model_channels
FREQ_EMB = 256            # frequency_embedding_size
NUM_SAMPLING_STEPS = 1000  # unused in forward()

# TODO(synk): `blocks` (res_blocks) is an externally-supplied nn.ModuleList in the
# reference constructor; this implementation covers the blocks=[] case, so the
# per-block transformer compute (and the cond_embed / time_proj tensors that only
# feed those blocks) is not reproduced here.


# ---------------- parameter init (deterministic, mirrors initialize_weights) ----------------
def _xavier_uniform(key, fan_in, fan_out):
    limit = math.sqrt(6.0 / (fan_in + fan_out))
    # stored (in, out) so forward is x @ W
    return jax.random.uniform(key, (fan_in, fan_out), jnp.float32, -limit, limit)


def init_params(key):
    ks = jax.random.split(key, 8)
    p = {}
    # TimestepEmbedder: TimestepEmbedding linear_1 / linear_2
    p["te_w1"] = _xavier_uniform(ks[0], FREQ_EMB, WIDTH)
    p["te_b1"] = jnp.zeros((WIDTH,), jnp.float32)
    p["te_w2"] = _xavier_uniform(ks[1], WIDTH, WIDTH)
    p["te_b2"] = jnp.zeros((WIDTH,), jnp.float32)
    # time_proj / cond_embed exist in the module but only feed res_blocks (empty here).
    p["tp_w"] = _xavier_uniform(ks[2], WIDTH, WIDTH * 6)
    p["tp_b"] = jnp.zeros((WIDTH * 6,), jnp.float32)
    p["ce_w"] = _xavier_uniform(ks[3], Z_CHANNELS, WIDTH)
    p["ce_b"] = jnp.zeros((WIDTH,), jnp.float32)
    # input_proj
    p["ip_w"] = _xavier_uniform(ks[4], TARGET_CHANNELS, WIDTH)
    p["ip_b"] = jnp.zeros((WIDTH,), jnp.float32)
    # FinalLayer: linear zero-init, scale_shift_table randn / sqrt(width)
    p["fl_w"] = jnp.zeros((WIDTH, TARGET_CHANNELS), jnp.float32)
    p["fl_b"] = jnp.zeros((TARGET_CHANNELS,), jnp.float32)
    p["scale_shift_table"] = (
        jax.random.normal(ks[5], (1, 2, WIDTH), jnp.float32) / math.sqrt(WIDTH)
    )
    # diffusion_pos_embed_learned ~ N(0, 0.02)
    p["pos"] = 0.02 * jax.random.normal(ks[6], (1, DIFF_SEQLEN, WIDTH), jnp.float32)
    return p


# ---------------- Pallas kernel: whole problem, one invocation, loss out ----------------
def diffdecoder_kernel(
    ts_ref,      # SMEM (B,)   f32 timesteps
    emb_ref,     # (B, FREQ)   sinusoidal [cos, sin] embedding
    target_ref,  # (B*S, Cin)
    noises_ref,  # (B*S, Cin)
    pos_ref,     # (S, W)      diffusion_pos_embed_learned
    ip_b_ref,    # (1, W)      input_proj bias
    sst_ref,     # (2, W)      scale_shift_table  (row 0 = shift, row 1 = scale)
    te_w1_ref,   # (FREQ, W)
    te_b1_ref,   # (1, W)
    te_w2_ref,   # (W, W)
    te_b2_ref,   # (1, W)
    ip_w_ref,    # (Cin, W)
    fl_w_ref,    # (W, Cout)
    fl_b_ref,    # (1, Cout)
    loss_ref,    # (1, 1) out  mean squared error
    *, batch, seqlen,
):
    # ---- TimestepEmbedding MLP: linear_1 -> SiLU -> linear_2 (M = batch rows) ----
    h = jnp.dot(emb_ref[...], te_w1_ref[...], preferred_element_type=jnp.float32)
    h = h + te_b1_ref[...]
    h = h * (1.0 / (1.0 + jnp.exp(-h)))                       # SiLU via exp (EUP)
    temb = jnp.dot(h, te_w2_ref[...], preferred_element_type=jnp.float32)
    temb = temb + te_b2_ref[...]                              # (B, W)

    # FinalLayer adaLN parameters (per batch row)
    shift = temb + sst_ref[0:1, :]                            # (B, W)
    scale1 = 1.0 + temb + sst_ref[1:2, :]                     # (B, W)

    # ---- forward-process mixing; per-batch scalar t/1000, static half-slices ----
    target = target_ref[...]
    diff = noises_ref[...] - target                           # model_target (B*S, Cin)
    mi_rows = []
    for b in range(batch):
        rows = slice(b * seqlen, (b + 1) * seqlen)
        tf_b = ts_ref[b] * (1.0 / 1000.0)                     # scalar from SMEM
        mi_rows.append(target[rows] + tf_b * diff[rows])
    model_input = jnp.concatenate(mi_rows, axis=0)            # (B*S, Cin)

    # ---- input_proj (+bias) + learned positional embedding ----
    x = jnp.dot(model_input, ip_w_ref[...], preferred_element_type=jnp.float32)
    posb = pos_ref[...] + ip_b_ref[...]                       # (S, W)
    x = x + jnp.concatenate([posb] * batch, axis=0)           # (B*S, W)

    # ---- LayerNorm (no affine, eps=1e-6), independent E[x] / E[x^2] reductions ----
    mu = jnp.mean(x, axis=-1, keepdims=True)
    msq = jnp.mean(x * x, axis=-1, keepdims=True)
    var = msq - mu * mu
    xn = (x - mu) * jax.lax.rsqrt(var + 1e-6)

    # ---- adaLN modulation (per-batch rows) + final linear ----
    h_rows = []
    for b in range(batch):
        rows = slice(b * seqlen, (b + 1) * seqlen)
        h_rows.append(xn[rows] * scale1[b:b + 1, :] + shift[b:b + 1, :])
    hmod = jnp.concatenate(h_rows, axis=0)                    # (B*S, W)
    out = jnp.dot(hmod, fl_w_ref[...], preferred_element_type=jnp.float32)
    out = out + fl_b_ref[...]                                 # (B*S, Cout)

    # ---- MSE loss, written once ----
    d = out - diff
    n_elems = d.shape[0] * d.shape[1]
    loss_ref[...] = jnp.sum(d * d, keepdims=True) * (1.0 / n_elems)


def diffdecoder_loss(params, target, z, noises, timestep):
    del z  # cond_embed(z) only feeds res_blocks, which are empty here.
    Bn, S, Cin = target.shape
    W = params["ip_w"].shape[1]
    Cout = params["fl_w"].shape[1]

    # Sinusoidal timestep embedding (diffusers Timesteps, flip_sin_to_cos=True,
    # downscale_freq_shift=0).  NOTE(synk): sin/cos kept in JAX (one tiny O(B*256)
    # fusion) because Mosaic sin/cos lowering is not guaranteed; everything
    # downstream (embedder MLP, adaLN, main path, mean) is fused into the kernel.
    tsf = timestep.astype(jnp.float32)                                    # (B,)
    half = FREQ_EMB // 2
    freqs = jnp.exp((-math.log(10000.0) / half) * jnp.arange(half, dtype=jnp.float32))
    arg = tsf[:, None] * freqs[None, :]
    emb = jnp.concatenate([jnp.cos(arg), jnp.sin(arg)], axis=-1)          # (B, FREQ)

    target2d = target.reshape(Bn * S, Cin)
    noises2d = noises.reshape(Bn * S, Cin)

    operands = (
        tsf,                                   # -> SMEM
        emb,
        target2d,
        noises2d,
        params["pos"][0],                      # (S, W)
        params["ip_b"].reshape(1, W),
        params["scale_shift_table"][0],        # (2, W)
        params["te_w1"],
        params["te_b1"].reshape(1, W),
        params["te_w2"],
        params["te_b2"].reshape(1, W),
        params["ip_w"],
        params["fl_w"],
        params["fl_b"].reshape(1, Cout),
    )

    smem = pl.BlockSpec(memory_space=pltpu.MemorySpace.SMEM)
    vmem = pl.BlockSpec(memory_space=pltpu.MemorySpace.VMEM)
    in_specs = [smem] + [vmem] * (len(operands) - 1)

    flops = (2 * Bn * S * Cin * W + 2 * Bn * S * W * Cout       # main matmuls
             + 2 * Bn * FREQ_EMB * W + 2 * Bn * W * W           # embedder MLP
             + 12 * Bn * S * W)                                  # elementwise/LN
    bytes_accessed = int(sum(o.size for o in operands) * 4 + 4)
    cost = pl.CostEstimate(flops=int(flops),
                           transcendentals=int(Bn * W + Bn * S),
                           bytes_accessed=bytes_accessed)

    # TODO(synk): if ever run at larger effective batch, reintroduce a batch grid
    # axis with dimension_semantics=("parallel",) so v7x's two TensorCores split
    # it; at B=2 a single gridless invocation is cheaper than splitting.
    loss = pl.pallas_call(
        functools.partial(diffdecoder_kernel, batch=Bn, seqlen=S),
        out_shape=jax.ShapeDtypeStruct((1, 1), jnp.float32),
        in_specs=in_specs,
        out_specs=vmem,
        cost_estimate=cost,
    )(*operands)
    return loss[0, 0]


# ---------------- pure-JAX reference (for the nonzero-final-layer check) ----------------
def diffdecoder_loss_ref(params, target, z, noises, timestep):
    del z
    hp = jax.lax.Precision.HIGHEST
    half = FREQ_EMB // 2
    freqs = jnp.exp((-math.log(10000.0) / half) * jnp.arange(half, dtype=jnp.float32))
    arg = timestep.astype(jnp.float32)[:, None] * freqs[None, :]
    emb = jnp.concatenate([jnp.cos(arg), jnp.sin(arg)], axis=-1)
    h = jax.nn.silu(jnp.dot(emb, params["te_w1"], precision=hp) + params["te_b1"])
    temb = jnp.dot(h, params["te_w2"], precision=hp) + params["te_b2"]
    tf = (timestep.astype(jnp.float32) / 1000.0)[:, None, None]
    model_input = (1.0 - tf) * target + tf * noises
    model_target = noises - target
    x = jnp.dot(model_input, params["ip_w"], precision=hp) + params["ip_b"]
    x = x + params["pos"]
    mu = jnp.mean(x, axis=-1, keepdims=True)
    var = jnp.mean((x - mu) ** 2, axis=-1, keepdims=True)
    xn = (x - mu) / jnp.sqrt(var + 1e-6)
    table = params["scale_shift_table"] + temb[:, None, :]
    shift = table[:, 0:1, :]
    scale = table[:, 1:2, :]
    out = jnp.dot(xn * (1.0 + scale) + shift, params["fl_w"], precision=hp) + params["fl_b"]
    return jnp.mean((out - model_target) ** 2)


if __name__ == "__main__":
    key = jax.random.PRNGKey(0)
    kp, kt, kz, kn, ks, kf1, kf2 = jax.random.split(key, 7)

    params = init_params(kp)
    target = jax.random.normal(kt, (B, DIFF_SEQLEN, TARGET_CHANNELS), jnp.float32)
    z = jax.random.normal(kz, (B, DIFF_SEQLEN, Z_CHANNELS), jnp.float32)
    # forward()'s internal randomness, made deterministic here:
    noises = jax.random.normal(kn, (B, DIFF_SEQLEN, TARGET_CHANNELS), jnp.float32)
    # sample_logit_normal(size=B) * 1000 -> long (truncation)
    timestep = (jax.nn.sigmoid(jax.random.normal(ks, (B,), jnp.float32)) * 1000.0).astype(jnp.int32)

    loss_fn = jax.jit(diffdecoder_loss)

    # Check 1: zero-initialized final layer (per initialize_weights) => model_output == 0,
    # so loss must equal mean((noises - target) ** 2).
    loss = jax.block_until_ready(loss_fn(params, target, z, noises, timestep))
    ref0 = jnp.mean((noises - target) ** 2)
    assert jnp.allclose(loss, ref0, rtol=1e-5, atol=1e-5), (float(loss), float(ref0))

    # Check 2: nonzero final layer exercises input_proj / LayerNorm / adaLN / final
    # matmul against a pure-JAX reference.
    params_nz = dict(params)
    params_nz["fl_w"] = _xavier_uniform(kf1, WIDTH, TARGET_CHANNELS)
    params_nz["fl_b"] = 0.02 * jax.random.normal(kf2, (TARGET_CHANNELS,), jnp.float32)
    loss_nz = jax.block_until_ready(loss_fn(params_nz, target, z, noises, timestep))
    ref_nz = diffdecoder_loss_ref(params_nz, target, z, noises, timestep)
    assert jnp.allclose(loss_nz, ref_nz, rtol=1e-3, atol=1e-5), (float(loss_nz), float(ref_nz))

    print("KERNEL_OK")
</pallas_src>

<mosaic_0001>
module attributes {stable_mosaic.version = 11 : i64} {
  func.func @diffdecoder_kernel(%arg0: memref<2xf32, #tpu.memory_space<smem>>, %arg1: memref<2x256xf32, #tpu.memory_space<vmem>>, %arg2: memref<128x16xf32, #tpu.memory_space<vmem>>, %arg3: memref<128x16xf32, #tpu.memory_space<vmem>>, %arg4: memref<64x128xf32, #tpu.memory_space<vmem>>, %arg5: memref<1x128xf32, #tpu.memory_space<vmem>>, %arg6: memref<2x128xf32, #tpu.memory_space<vmem>>, %arg7: memref<256x128xf32, #tpu.memory_space<vmem>>, %arg8: memref<1x128xf32, #tpu.memory_space<vmem>>, %arg9: memref<128x128xf32, #tpu.memory_space<vmem>>, %arg10: memref<1x128xf32, #tpu.memory_space<vmem>>, %arg11: memref<16x128xf32, #tpu.memory_space<vmem>>, %arg12: memref<128x16xf32, #tpu.memory_space<vmem>>, %arg13: memref<1x16xf32, #tpu.memory_space<vmem>>, %arg14: memref<1x1xf32, #tpu.memory_space<vmem>>) attributes {dimension_semantics = [], scalar_prefetch = 0 : i64, scratch_operands = 0 : i64, tpu.core_type = #tpu.core_type<tc>} {
    %c0 = arith.constant 0 : index
    %c0_0 = arith.constant 0 : index
    %0 = vector.load %arg1[%c0, %c0_0] : memref<2x256xf32, #tpu.memory_space<vmem>>, vector<2x256xf32>
    %c0_1 = arith.constant 0 : index
    %c0_2 = arith.constant 0 : index
    %1 = vector.load %arg7[%c0_1, %c0_2] : memref<256x128xf32, #tpu.memory_space<vmem>>, vector<256x128xf32>
    %cst = arith.constant dense<0.000000e+00> : vector<2x128xf32>
    %2 = tpu.matmul %0, %1, %cst {dimension_numbers = #tpu.dot_dimension_numbers<[1], [0], [0], [1], [0, 0, 1, 1], [], []>} : vector<2x256xf32>, vector<256x128xf32>, vector<2x128xf32> -> vector<2x128xf32>
    %c0_3 = arith.constant 0 : index
    %c0_4 = arith.constant 0 : index
    %3 = vector.load %arg8[%c0_3, %c0_4] : memref<1x128xf32, #tpu.memory_space<vmem>>, vector<1x128xf32>
    %4 = vector.broadcast %3 : vector<1x128xf32> to vector<2x128xf32>
    %5 = arith.addf %2, %4 : vector<2x128xf32>
    %cst_5 = arith.constant 0.000000e+00 : f32
    %6 = vector.broadcast %cst_5 : f32 to vector<2x128xf32>
    %7 = arith.subf %6, %5 : vector<2x128xf32>
    %8 = math.exp %7 : vector<2x128xf32>
    %cst_6 = arith.constant 1.000000e+00 : f32
    %9 = vector.broadcast %cst_6 : f32 to vector<2x128xf32>
    %10 = arith.addf %9, %8 : vector<2x128xf32>
    %cst_7 = arith.constant 1.000000e+00 : f32
    %11 = vector.broadcast %cst_7 : f32 to vector<2x128xf32>
    %12 = arith.divf %11, %10 : vector<2x128xf32>
    %13 = arith.mulf %5, %12 : vector<2x128xf32>
    %c0_8 = arith.constant 0 : index
    %c0_9 = arith.constant 0 : index
    %14 = vector.load %arg9[%c0_8, %c0_9] : memref<128x128xf32, #tpu.memory_space<vmem>>, vector<128x128xf32>
    %cst_10 = arith.constant dense<0.000000e+00> : vector<2x128xf32>
    %15 = tpu.matmul %13, %14, %cst_10 {dimension_numbers = #tpu.dot_dimension_numbers<[1], [0], [0], [1], [0, 0, 1, 1], [], []>} : vector<2x128xf32>, vector<128x128xf32>, vector<2x128xf32> -> vector<2x128xf32>
    %c0_11 = arith.constant 0 : index
    %c0_12 = arith.constant 0 : index
    %16 = vector.load %arg10[%c0_11, %c0_12] : memref<1x128xf32, #tpu.memory_space<vmem>>, vector<1x128xf32>
    %17 = vector.broadcast %16 : vector<1x128xf32> to vector<2x128xf32>
    %18 = arith.addf %15, %17 : vector<2x128xf32>
    %c0_13 = arith.constant 0 : index
    %c0_14 = arith.constant 0 : index
    %19 = vector.load %arg6[%c0_13, %c0_14] : memref<2x128xf32, #tpu.memory_space<vmem>>, vector<1x128xf32>
    %20 = vector.broadcast %19 : vector<1x128xf32> to vector<2x128xf32>
    %21 = arith.addf %18, %20 : vector<2x128xf32>
    %cst_15 = arith.constant 1.000000e+00 : f32
    %22 = vector.broadcast %cst_15 : f32 to vector<2x128xf32>
    %23 = arith.addf %22, %18 : vector<2x128xf32>
    %c1 = arith.constant 1 : index
    %c0_16 = arith.constant 0 : index
    %24 = vector.load %arg6[%c1, %c0_16] : memref<2x128xf32, #tpu.memory_space<vmem>>, vector<1x128xf32>
    %25 = vector.broadcast %24 : vector<1x128xf32> to vector<2x128xf32>
    %26 = arith.addf %23, %25 : vector<2x128xf32>
    %c0_17 = arith.constant 0 : index
    %c0_18 = arith.constant 0 : index
    %27 = vector.load %arg2[%c0_17, %c0_18] : memref<128x16xf32, #tpu.memory_space<vmem>>, vector<128x16xf32>
    %c0_19 = arith.constant 0 : index
    %c0_20 = arith.constant 0 : index
    %28 = vector.load %arg3[%c0_19, %c0_20] : memref<128x16xf32, #tpu.memory_space<vmem>>, vector<128x16xf32>
    %29 = arith.subf %28, %27 : vector<128x16xf32>
    %c0_21 = arith.constant 0 : index
    %30 = memref.load %arg0[%c0_21] : memref<2xf32, #tpu.memory_space<smem>>
    %cst_22 = arith.constant 1.000000e-03 : f32
    %31 = arith.mulf %30, %cst_22 : f32
    %32 = vector.extract_strided_slice %27 {offsets = [0, 0], sizes = [64, 16], strides = [1, 1]} : vector<128x16xf32> to vector<64x16xf32>
    %33 = vector.extract_strided_slice %29 {offsets = [0, 0], sizes = [64, 16], strides = [1, 1]} : vector<128x16xf32> to vector<64x16xf32>
    %34 = vector.broadcast %31 : f32 to vector<64x16xf32>
    %35 = arith.mulf %34, %33 : vector<64x16xf32>
    %36 = arith.addf %32, %35 : vector<64x16xf32>
    %c1_23 = arith.constant 1 : index
    %37 = memref.load %arg0[%c1_23] : memref<2xf32, #tpu.memory_space<smem>>
    %cst_24 = arith.constant 1.000000e-03 : f32
    %38 = arith.mulf %37, %cst_24 : f32
    %39 = vector.extract_strided_slice %27 {offsets = [64, 0], sizes = [64, 16], strides = [1, 1]} : vector<128x16xf32> to vector<64x16xf32>
    %40 = vector.extract_strided_slice %29 {offsets = [64, 0], sizes = [64, 16], strides = [1, 1]} : vector<128x16xf32> to vector<64x16xf32>
    %41 = vector.broadcast %38 : f32 to vector<64x16xf32>
    %42 = arith.mulf %41, %40 : vector<64x16xf32>
    %43 = arith.addf %39, %42 : vector<64x16xf32>
    %44 = tpu.concatenate %36, %43 in 0 : vector<64x16xf32>, vector<64x16xf32> -> vector<128x16xf32>
    %c0_25 = arith.constant 0 : index
    %c0_26 = arith.constant 0 : index
    %45 = vector.load %arg11[%c0_25, %c0_26] : memref<16x128xf32, #tpu.memory_space<vmem>>, vector<16x128xf32>
    %cst_27 = arith.constant dense<0.000000e+00> : vector<128x128xf32>
    %46 = tpu.matmul %44, %45, %cst_27 {dimension_numbers = #tpu.dot_dimension_numbers<[1], [0], [0], [1], [0, 0, 1, 1], [], []>} : vector<128x16xf32>, vector<16x128xf32>, vector<128x128xf32> -> vector<128x128xf32>
    %c0_28 = arith.constant 0 : index
    %c0_29 = arith.constant 0 : index
    %47 = vector.load %arg4[%c0_28, %c0_29] : memref<64x128xf32, #tpu.memory_space<vmem>>, vector<64x128xf32>
    %c0_30 = arith.constant 0 : index
    %c0_31 = arith.constant 0 : index
    %48 = vector.load %arg5[%c0_30, %c0_31] : memref<1x128xf32, #tpu.memory_space<vmem>>, vector<1x128xf32>
    %49 = vector.broadcast %48 : vector<1x128xf32> to vector<64x128xf32>
    %50 = arith.addf %47, %49 : vector<64x128xf32>
    %51 = tpu.concatenate %50, %50 in 0 : vector<64x128xf32>, vector<64x128xf32> -> vector<128x128xf32>
    %52 = arith.addf %46, %51 : vector<128x128xf32>
    %cst_32 = arith.constant dense<0.000000e+00> : vector<128xf32>
    %53 = vector.multi_reduction <add>, %52, %cst_32 [1] : vector<128x128xf32> to vector<128xf32>
    %54 = vector.shape_cast %53 : vector<128xf32> to vector<128x1xf32>
    %cst_33 = arith.constant 1.280000e+02 : f32
    %55 = vector.broadcast %cst_33 : f32 to vector<128x1xf32>
    %56 = arith.divf %54, %55 : vector<128x1xf32>
    %57 = arith.mulf %52, %52 : vector<128x128xf32>
    %cst_34 = arith.constant dense<0.000000e+00> : vector<128xf32>
    %58 = vector.multi_reduction <add>, %57, %cst_34 [1] : vector<128x128xf32> to vector<128xf32>
    %59 = vector.shape_cast %58 : vector<128xf32> to vector<128x1xf32>
    %cst_35 = arith.constant 1.280000e+02 : f32
    %60 = vector.broadcast %cst_35 : f32 to vector<128x1xf32>
    %61 = arith.divf %59, %60 : vector<128x1xf32>
    %62 = arith.mulf %56, %56 : vector<128x1xf32>
    %63 = arith.subf %61, %62 : vector<128x1xf32>
    %64 = vector.broadcast %56 : vector<128x1xf32> to vector<128x128xf32>
    %65 = arith.subf %52, %64 : vector<128x128xf32>
    %cst_36 = arith.constant 9.99999997E-7 : f32
    %66 = vector.broadcast %cst_36 : f32 to vector<128x1xf32>
    %67 = arith.addf %63, %66 : vector<128x1xf32>
    %68 = math.rsqrt %67 : vector<128x1xf32>
    %69 = vector.broadcast %68 : vector<128x1xf32> to vector<128x128xf32>
    %70 = arith.mulf %65, %69 : vector<128x128xf32>
    %71 = vector.extract_strided_slice %70 {offsets = [0, 0], sizes = [64, 128], strides = [1, 1]} : vector<128x128xf32> to vector<64x128xf32>
    %72 = vector.extract_strided_slice %26 {offsets = [0, 0], sizes = [1, 128], strides = [1, 1]} : vector<2x128xf32> to vector<1x128xf32>
    %73 = vector.broadcast %72 : vector<1x128xf32> to vector<64x128xf32>
    %74 = arith.mulf %71, %73 : vector<64x128xf32>
    %75 = vector.extract_strided_slice %21 {offsets = [0, 0], sizes = [1, 128], strides = [1, 1]} : vector<2x128xf32> to vector<1x128xf32>
    %76 = vector.broadcast %75 : vector<1x128xf32> to vector<64x128xf32>
    %77 = arith.addf %74, %76 : vector<64x128xf32>
    %78 = vector.extract_strided_slice %70 {offsets = [64, 0], sizes = [64, 128], strides = [1, 1]} : vector<128x128xf32> to vector<64x128xf32>
    %79 = vector.extract_strided_slice %26 {offsets = [1, 0], sizes = [1, 128], strides = [1, 1]} : vector<2x128xf32> to vector<1x128xf32>
    %80 = vector.broadcast %79 : vector<1x128xf32> to vector<64x128xf32>
    %81 = arith.mulf %78, %80 : vector<64x128xf32>
    %82 = vector.extract_strided_slice %21 {offsets = [1, 0], sizes = [1, 128], strides = [1, 1]} : vector<2x128xf32> to vector<1x128xf32>
    %83 = vector.broadcast %82 : vector<1x128xf32> to vector<64x128xf32>
    %84 = arith.addf %81, %83 : vector<64x128xf32>
    %85 = tpu.concatenate %77, %84 in 0 : vector<64x128xf32>, vector<64x128xf32> -> vector<128x128xf32>
    %c0_37 = arith.constant 0 : index
    %c0_38 = arith.constant 0 : index
    %86 = vector.load %arg12[%c0_37, %c0_38] : memref<128x16xf32, #tpu.memory_space<vmem>>, vector<128x16xf32>
    %cst_39 = arith.constant dense<0.000000e+00> : vector<128x16xf32>
    %87 = tpu.matmul %85, %86, %cst_39 {dimension_numbers = #tpu.dot_dimension_numbers<[1], [0], [0], [1], [0, 0, 1, 1], [], []>} : vector<128x128xf32>, vector<128x16xf32>, vector<128x16xf32> -> vector<128x16xf32>
    %c0_40 = arith.constant 0 : index
    %c0_41 = arith.constant 0 : index
    %88 = vector.load %arg13[%c0_40, %c0_41] : memref<1x16xf32, #tpu.memory_space<vmem>>, vector<1x16xf32>
    %89 = vector.broadcast %88 : vector<1x16xf32> to vector<128x16xf32>
    %90 = arith.addf %87, %89 : vector<128x16xf32>
    %91 = arith.subf %90, %29 : vector<128x16xf32>
    %92 = arith.mulf %91, %91 : vector<128x16xf32>
    %93 = vector.shape_cast %92 : vector<128x16xf32> to vector<1x128x16xf32>
    %cst_42 = arith.constant dense<0.000000e+00> : vector<1xf32>
    %94 = vector.multi_reduction <add>, %93, %cst_42 [1, 2] : vector<1x128x16xf32> to vector<1xf32>
    %95 = vector.shape_cast %94 : vector<1xf32> to vector<1x1x1xf32>
    %96 = vector.extract %95[0, 0, 0] : f32 from vector<1x1x1xf32>
    %97 = vector.broadcast %96 : f32 to vector<1x1xf32>
    %cst_43 = arith.constant 4.8828125E-4 : f32
    %98 = vector.broadcast %cst_43 : f32 to vector<1x1xf32>
    %99 = arith.mulf %97, %98 : vector<1x1xf32>
    %c0_44 = arith.constant 0 : index
    %c0_45 = arith.constant 0 : index
    %100 = vector.load %arg14[%c0_44, %c0_45] : memref<1x1xf32, #tpu.memory_space<vmem>>, vector<1x1xf32>
    tpu.vector_store %arg14[%c0_44, %c0_45], %99 {strides = array<i32>} : memref<1x1xf32, #tpu.memory_space<vmem>>, vector<1x1xf32>,
    return
  }
}

</mosaic_0001>

<llo_original>
// kernel: diffdecoder_loss.1
$region0: #{diffdecoder_loss.1}
  #allocation0 [shape = 'u32[]', space=smem, size = 0x4, offset = 0x4, fixed_abs, tag = 'smem constant byte address 0x4 - core index']
  #allocation1 [shape = 'u32[144,128]{1,0:T(1,128)}', space=vmem, size = 0x12000, scoped, tag = 'internal scratch']
  %s0 = inlined_call_operand.vmem [shape: f32[2], index: 0, kind: input, shape index: {}]
  %s1 = inlined_call_operand.vmem [shape: f32[2,256], index: 1, kind: input, shape index: {}]
  %s2 = inlined_call_operand.vmem [shape: f32[128,16], index: 2, kind: input, shape index: {}]
  %s3 = inlined_call_operand.vmem [shape: f32[128,16], index: 3, kind: input, shape index: {}]
  %s4 = inlined_call_operand.vmem [shape: f32[64,128], index: 4, kind: input, shape index: {}]
  %s5 = inlined_call_operand.hbm [shape: f32[1,128], index: 5, kind: input, shape index: {}]
  %s6 = inlined_call_operand.vmem [shape: f32[2,128], index: 6, kind: input, shape index: {}]
  %s7 = inlined_call_operand.vmem [shape: f32[256,128], index: 7, kind: input, shape index: {}]
  %s8 = inlined_call_operand.hbm [shape: f32[1,128], index: 8, kind: input, shape index: {}]
  %s9 = inlined_call_operand.vmem [shape: f32[128,128], index: 9, kind: input, shape index: {}]
  %s10 = inlined_call_operand.hbm [shape: f32[1,128], index: 10, kind: input, shape index: {}]
  %s11 = inlined_call_operand.hbm [shape: f32[16,128], index: 11, kind: input, shape index: {}]
  %s12 = inlined_call_operand.vmem [shape: f32[128,16], index: 12, kind: input, shape index: {}]
  %s13 = inlined_call_operand.hbm [shape: f32[1,16], index: 13, kind: input, shape index: {}]
  %s14 = inlined_call_operand.hbm [shape: f32[1,1], index: 14, kind: output, shape index: {}]
  %s15 = sld [smem:[#allocation0]]
  $region90: #{diffdecoder_loss.1} parent=0
    _
  %s17 = ssub.s32 1, %s15
  %s18 = scalar_select 0, %s17, %s15
  $region1: #{diffdecoder_loss.1} parent=0
    #allocation2 [shape = 'u8[512]{0}', space=smem, size = 0x200, scoped, tag = 'input window, operand 0, single buffered']
    #allocation3 [shape = 's32[1]{0}', space=sflag, size = 0x4, scoped, tag = 'scoped memory for diffdecoder_loss.1']
    #allocation4 [shape = 's32[1]{0}', space=sflag, size = 0x4, scoped, tag = 'scoped memory for diffdecoder_loss.1']
    #allocation5 [shape = 's32[1]{0}', space=sflag, size = 0x4, scoped, tag = 'scoped memory for diffdecoder_loss.1']
    #allocation6 [shape = 'u8[512]{0}', space=vmem, size = 0x400, scoped, tag = 'input window, operand 5, single buffered']
    #allocation7 [shape = 'u8[512]{0}', space=vmem, size = 0x400, scoped, tag = 'input window, operand 8, single buffered']
    #allocation8 [shape = 's32[1]{0}', space=sflag, size = 0x4, scoped, tag = 'scoped memory for diffdecoder_loss.1']
    #allocation9 [shape = 'u8[512]{0}', space=vmem, size = 0x400, scoped, tag = 'input window, operand 10, single buffered']
    #allocation10 [shape = 'u8[8192]{0}', space=vmem, size = 0x2000, scoped, tag = 'input window, operand 11, single buffered']
    #allocation11 [shape = 's32[1]{0}', space=sflag, size = 0x4, scoped, tag = 'scoped memory for diffdecoder_loss.1']
    #allocation12 [shape = 'u8[512]{0}', space=vmem, size = 0x400, scoped, tag = 'input window, operand 13, single buffered']
    #allocation13 [shape = 'u8[512]{0}', space=vmem, size = 0x400, scoped, tag = 'output window, operand 0, single buffered']
    %19 = vsyncpa [#allocation5], 0
    %20 = vsyncpa [#allocation3], 0
    %21 = vsyncpa [#allocation8], 0
    %22 = vsyncpa [#allocation11], 0
    %23 = vsyncpa [#allocation4], 0
    // Predicated region
    $region2: #{diffdecoder_loss.1} parent=1 // pred_check
      _
    $region3: #{diffdecoder_loss.1} parent=1 // pred_check_branch
      %25 = sbr.rel (0) target = $region5
    $region4: #{diffdecoder_loss.1} parent=1 // pred_region
      %s27 = ssub.s32 16, 16
      %28 = vsyncadd [#allocation5], %s27
      %s30 = sshll.u32 %s0, 4
      %s31 = int_to_ptr.vmem [resolvable:$true] %s30
      %33 = dma.vmem_to_smem %s31, 16, [#allocation2], [#allocation5]
    $region5: #{diffdecoder_loss.1} parent=1 // pred_fallthru
      _
    // Predicated region
    $region6: #{diffdecoder_loss.1} parent=1 // pred_check
      _
    $region7: #{diffdecoder_loss.1} parent=1 // pred_check_branch
      %35 = sbr.rel (0) target = $region9
    $region8: #{diffdecoder_loss.1} parent=1 // pred_region
      _
    $region9: #{diffdecoder_loss.1} parent=1 // pred_fallthru
      _
    // Predicated region
    $region10: #{diffdecoder_loss.1} parent=1 // pred_check
      _
    $region11: #{diffdecoder_loss.1} parent=1 // pred_check_branch
      %37 = sbr.rel (0) target = $region13
    $region12: #{diffdecoder_loss.1} parent=1 // pred_region
      _
    $region13: #{diffdecoder_loss.1} parent=1 // pred_fallthru
      _
    // Predicated region
    $region14: #{diffdecoder_loss.1} parent=1 // pred_check
      _
    $region15: #{diffdecoder_loss.1} parent=1 // pred_check_branch
      %39 = sbr.rel (0) target = $region17
    $region16: #{diffdecoder_loss.1} parent=1 // pred_region
      _
    $region17: #{diffdecoder_loss.1} parent=1 // pred_fallthru
      _
    // Predicated region
    $region18: #{diffdecoder_loss.1} parent=1 // pred_check
      _
    $region19: #{diffdecoder_loss.1} parent=1 // pred_check_branch
      %41 = sbr.rel (0) target = $region21
    $region20: #{diffdecoder_loss.1} parent=1 // pred_region
      _
    $region21: #{diffdecoder_loss.1} parent=1 // pred_fallthru
      _
    // Predicated region
    $region22: #{diffdecoder_loss.1} parent=1 // pred_check
      _
    $region23: #{diffdecoder_loss.1} parent=1 // pred_check_branch
      %43 = sbr.rel (0) target = $region25
    $region24: #{diffdecoder_loss.1} parent=1 // pred_region
      %s45 = ssub.s32 16, 16
      %46 = vsyncadd [#allocation3], %s45
      %s48 = sshll.u32 [#allocation6], 4
      %s49 = int_to_ptr.vmem [resolvable:$true] %s48
      %51 = dma.hbm_to_vmem [thread:$0]  %s5, 16, %s49, [#allocation3]
    $region25: #{diffdecoder_loss.1} parent=1 // pred_fallthru
      _
    // Predicated region
    $region26: #{diffdecoder_loss.1} parent=1 // pred_check
      _
    $region27: #{diffdecoder_loss.1} parent=1 // pred_check_branch
      %53 = sbr.rel (0) target = $region29
    $region28: #{diffdecoder_loss.1} parent=1 // pred_region
      _
    $region29: #{diffdecoder_loss.1} parent=1 // pred_fallthru
      _
    // Predicated region
    $region30: #{diffdecoder_loss.1} parent=1 // pred_check
      _
    $region31: #{diffdecoder_loss.1} parent=1 // pred_check_branch
      %55 = sbr.rel (0) target = $region33
    $region32: #{diffdecoder_loss.1} parent=1 // pred_region
      _
    $region33: #{diffdecoder_loss.1} parent=1 // pred_fallthru
      _
    // Predicated region
    $region34: #{diffdecoder_loss.1} parent=1 // pred_check
      _
    $region35: #{diffdecoder_loss.1} parent=1 // pred_check_branch
      %57 = sbr.rel (0) target = $region37
    $region36: #{diffdecoder_loss.1} parent=1 // pred_region
      %s59 = ssub.s32 16, 16
      %60 = vsyncadd [#allocation8], %s59
      %s62 = sshll.u32 [#allocation7], 4
      %s63 = int_to_ptr.vmem [resolvable:$true] %s62
      %65 = dma.hbm_to_vmem [thread:$0]  %s8, 16, %s63, [#allocation8]
    $region37: #{diffdecoder_loss.1} parent=1 // pred_fallthru
      _
    // Predicated region
    $region38: #{diffdecoder_loss.1} parent=1 // pred_check
      _
    $region39: #{diffdecoder_loss.1} parent=1 // pred_check_branch
      %67 = sbr.rel (0) target = $region41
    $region40: #{diffdecoder_loss.1} parent=1 // pred_region
      _
    $region41: #{diffdecoder_loss.1} parent=1 // pred_fallthru
      _
    // Predicated region
    $region42: #{diffdecoder_loss.1} parent=1 // pred_check
      _
    $region43: #{diffdecoder_loss.1} parent=1 // pred_check_branch
      %69 = sbr.rel (0) target = $region45
    $region44: #{diffdecoder_loss.1} parent=1 // pred_region
      %s71 = ssub.s32 16, 16
      %72 = vsyncadd [#allocation8], %s71
      %s74 = sshll.u32 [#allocation9], 4
      %s75 = int_to_ptr.vmem [resolvable:$true] %s74
      %77 = dma.hbm_to_vmem [thread:$0]  %s10, 16, %s75, [#allocation8]
    $region45: #{diffdecoder_loss.1} parent=1 // pred_fallthru
      _
    // Predicated region
    $region46: #{diffdecoder_loss.1} parent=1 // pred_check
      _
    $region47: #{diffdecoder_loss.1} parent=1 // pred_check_branch
      %79 = sbr.rel (0) target = $region49
    $region48: #{diffdecoder_loss.1} parent=1 // pred_region
      %s81 = ssub.s32 256, 256
      %82 = vsyncadd [#allocation11], %s81
      %s83 = sshll.u32 [#allocation10], 4
      %s84 = int_to_ptr.vmem [resolvable:$true] %s83
      %89 = dma.hbm_to_vmem [thread:$0]  %s11, 256, %s84, [#allocation11], 128, 128, 8
    $region49: #{diffdecoder_loss.1} parent=1 // pred_fallthru
      _
    // Predicated region
    $region50: #{diffdecoder_loss.1} parent=1 // pred_check
      _
    $region51: #{diffdecoder_loss.1} parent=1 // pred_check_branch
      %91 = sbr.rel (0) target = $region53
    $region52: #{diffdecoder_loss.1} parent=1 // pred_region
      _
    $region53: #{diffdecoder_loss.1} parent=1 // pred_fallthru
      _
    // Predicated region
    $region54: #{diffdecoder_loss.1} parent=1 // pred_check
      _
    $region55: #{diffdecoder_loss.1} parent=1 // pred_check_branch
      %93 = sbr.rel (0) target = $region57
    $region56: #{diffdecoder_loss.1} parent=1 // pred_region
      %s95 = ssub.s32 16, 16
      %96 = vsyncadd [#allocation11], %s95
      %s98 = sshll.u32 [#allocation12], 4
      %s99 = int_to_ptr.vmem [resolvable:$true] %s98
      %101 = dma.hbm_to_vmem [thread:$0]  %s13, 16, %s99, [#allocation11]
    $region57: #{diffdecoder_loss.1} parent=1 // pred_fallthru
      _
    // Predicated region
    $region58: #{diffdecoder_loss.1} parent=1 // pred_check
      _
    $region59: #{diffdecoder_loss.1} parent=1 // pred_check_branch
      %103 = sbr.rel (0) target = $region61
    $region60: #{diffdecoder_loss.1} parent=1 // pred_region
      %104 = dma.done [#allocation5], 16
    $region61: #{diffdecoder_loss.1} parent=1 // pred_fallthru
      _
    // Predicated region
    $region62: #{diffdecoder_loss.1} parent=1 // pred_check
      _
    $region63: #{diffdecoder_loss.1} parent=1 // pred_check_branch
      %106 = sbr.rel (0) target = $region65
    $region64: #{diffdecoder_loss.1} parent=1 // pred_region
      %107 = dma.done [#allocation3], 16
    $region65: #{diffdecoder_loss.1} parent=1 // pred_fallthru
      _
    // Predicated region
    $region66: #{diffdecoder_loss.1} parent=1 // pred_check
      _
    $region67: #{diffdecoder_loss.1} parent=1 // pred_check_branch
      %109 = sbr.rel (0) target = $region69
    $region68: #{diffdecoder_loss.1} parent=1 // pred_region
      %110 = dma.done [#allocation8], 16
    $region69: #{diffdecoder_loss.1} parent=1 // pred_fallthru
      _
    // Predicated region
    $region70: #{diffdecoder_loss.1} parent=1 // pred_check
      _
    $region71: #{diffdecoder_loss.1} parent=1 // pred_check_branch
      %112 = sbr.rel (0) target = $region73
    $region72: #{diffdecoder_loss.1} parent=1 // pred_region
      %113 = dma.done [#allocation8], 16
    $region73: #{diffdecoder_loss.1} parent=1 // pred_fallthru
      _
    // Predicated region
    $region74: #{diffdecoder_loss.1} parent=1 // pred_check
      _
    $region75: #{diffdecoder_loss.1} parent=1 // pred_check_branch
      %115 = sbr.rel (0) target = $region77
    $region76: #{diffdecoder_loss.1} parent=1 // pred_region
      %116 = dma.done [#allocation11], 256
    $region77: #{diffdecoder_loss.1} parent=1 // pred_fallthru
      _
    // Predicated region
    $region78: #{diffdecoder_loss.1} parent=1 // pred_check
      _
    $region79: #{diffdecoder_loss.1} parent=1 // pred_check_branch
      %118 = sbr.rel (0) target = $region81
    $region80: #{diffdecoder_loss.1} parent=1 // pred_region
      %119 = dma.done [#allocation11], 16
    $region81: #{diffdecoder_loss.1} parent=1 // pred_fallthru
      _
    %120 = sfence
    %v121 = vld [vmem:[%s1] sm:$0xf]
    %v122 = vld [vmem:[%s7] sm:$0xff]
    %v123 = vld [vmem:[%s7 + $0x8] sm:$0xff]
    %v124 = vld [vmem:[%s7 + $0x10] sm:$0xff]
    %v125 = vld [vmem:[%s7 + $0x18] sm:$0xff]
    %v126 = vld [vmem:[%s7 + $0x20] sm:$0xff]
    %v127 = vld [vmem:[%s7 + $0x28] sm:$0xff]
    %v128 = vld [vmem:[%s7 + $0x30] sm:$0xff]
    %v129 = vld [vmem:[%s7 + $0x38] sm:$0xff]
    %v130 = vld [vmem:[%s7 + $0x40] sm:$0xff]
    %v131 = vld [vmem:[%s7 + $0x48] sm:$0xff]
    %v132 = vld [vmem:[%s7 + $0x50] sm:$0xff]
    %v133 = vld [vmem:[%s7 + $0x58] sm:$0xff]
    %v134 = vld [vmem:[%s7 + $0x60] sm:$0xff]
    %v135 = vld [vmem:[%s7 + $0x68] sm:$0xff]
    %v136 = vld [vmem:[%s7 + $0x70] sm:$0xff]
    %v137 = vld [vmem:[%s7 + $0x78] sm:$0xff]
    %v138 = vld [vmem:[%s7 + $0x80] sm:$0xff]
    %v139 = vld [vmem:[%s7 + $0x88] sm:$0xff]
    %v140 = vld [vmem:[%s7 + $0x90] sm:$0xff]
    %v141 = vld [vmem:[%s7 + $0x98] sm:$0xff]
    %v142 = vld [vmem:[%s7 + $0xa0] sm:$0xff]
    %v143 = vld [vmem:[%s7 + $0xa8] sm:$0xff]
    %v144 = vld [vmem:[%s7 + $0xb0] sm:$0xff]
    %v145 = vld [vmem:[%s7 + $0xb8] sm:$0xff]
    %v146 = vld [vmem:[%s7 + $0xc0] sm:$0xff]
    %v147 = vld [vmem:[%s7 + $0xc8] sm:$0xff]
    %v148 = vld [vmem:[%s7 + $0xd0] sm:$0xff]
    %v149 = vld [vmem:[%s7 + $0xd8] sm:$0xff]
    %v150 = vld [vmem:[%s7 + $0xe0] sm:$0xff]
    %v151 = vld [vmem:[%s7 + $0xe8] sm:$0xff]
    %v152 = vld [vmem:[%s7 + $0xf0] sm:$0xff]
    %v153 = vld [vmem:[%s7 + $0xf8] sm:$0xff]
    %v154 = vld [vmem:[#allocation7] sm:$0x1]
    %v156 = vlaneseq
    %v157 = vshrl.u32 %v156, 7
    %v158 = vsub.s32 0, %v157
    %v159 = vrot.slane %v154, %v158
    %v163 = vunpack.c.l.s4 1983009808
    %v164 = vunpack.c.0.s8 %v163
    %v165 = vlaneseq
    %v166 = vshrl.u32 %v165, 7
    %v167 = vsub.s32 %v164, %v166
    %v168 = vrot.slane %v121, %v167
    %v169 = vcombine.high %v168, %v168
    %172 = vmatprep.subr.mxu0 0.0
    %173 = vmatpush1.msra.mxu0 %v137
    %174 = vmatprep.subr.mxu0 0.0
    %175 = vmatpush1.msra.mxu0 %v136
    %176 = vmatprep.subr.mxu0 0.0
    %177 = vmatpush1.msra.mxu0 %v135
    %178 = vmatprep.subr.mxu0 0.0
    %179 = vmatpush1.msra.mxu0 %v134
    %180 = vmatprep.subr.mxu0 0.0
    %181 = vmatpush1.msra.mxu0 %v133
    %182 = vmatprep.subr.mxu0 0.0
    %183 = vmatpush1.msra.mxu0 %v132
    %184 = vmatprep.subr.mxu0 0.0
    %185 = vmatpush1.msra.mxu0 %v131
    %186 = vmatprep.subr.mxu0 0.0
    %187 = vmatpush1.msra.mxu0 %v130
    %188 = vmatprep.subr.mxu0 0.0
    %189 = vmatpush1.msra.mxu0 %v129
    %190 = vmatprep.subr.mxu0 0.0
    %191 = vmatpush1.msra.mxu0 %v128
    %192 = vmatprep.subr.mxu0 0.0
    %193 = vmatpush1.msra.mxu0 %v127
    %194 = vmatprep.subr.mxu0 0.0
    %195 = vmatpush1.msra.mxu0 %v126
    %196 = vmatprep.subr.mxu0 0.0
    %197 = vmatpush1.msra.mxu0 %v125
    %198 = vmatprep.subr.mxu0 0.0
    %199 = vmatpush1.msra.mxu0 %v124
    %200 = vmatprep.subr.mxu0 0.0
    %201 = vmatpush1.msra.mxu0 %v123
    %202 = vmatprep.subr.mxu0 0.0
    %203 = vmatpush1.msra.mxu0 %v122
    %204 = vmatprep.subr.mxu0 0.0
    %205 = vmatpush2.msra.mxu0 %v153
    %206 = vmatprep.subr.mxu0 0.0
    %207 = vmatpush2.msra.mxu0 %v152
    %208 = vmatprep.subr.mxu0 0.0
    %209 = vmatpush2.msra.mxu0 %v151
    %210 = vmatprep.subr.mxu0 0.0
    %211 = vmatpush2.msra.mxu0 %v150
    %212 = vmatprep.subr.mxu0 0.0
    %213 = vmatpush2.msra.mxu0 %v149
    %214 = vmatprep.subr.mxu0 0.0
    %215 = vmatpush2.msra.mxu0 %v148
    %216 = vmatprep.subr.mxu0 0.0
    %217 = vmatpush2.msra.mxu0 %v147
    %218 = vmatprep.subr.mxu0 0.0
    %219 = vmatpush2.msra.mxu0 %v146
    %220 = vmatprep.subr.mxu0 0.0
    %221 = vmatpush2.msra.mxu0 %v145
    %222 = vmatprep.subr.mxu0 0.0
    %223 = vmatpush2.msra.mxu0 %v144
    %224 = vmatprep.subr.mxu0 0.0
    %225 = vmatpush2.msra.mxu0 %v143
    %226 = vmatprep.subr.mxu0 0.0
    %227 = vmatpush2.msra.mxu0 %v142
    %228 = vmatprep.subr.mxu0 0.0
    %229 = vmatpush2.msra.mxu0 %v141
    %230 = vmatprep.subr.mxu0 0.0
    %231 = vmatpush2.msra.mxu0 %v140
    %232 = vmatprep.subr.mxu0 0.0
    %233 = vmatpush2.msra.mxu0 %v139
    %234 = vmatprep.subr.mxu0 0.0
    %235 = vmatpush2.msra.mxu0 %v138
    %236 = vmatprep.mubr.f32.mxu0 %v169
    %237 = vmatmul.mubr.f32.gmra.mxu0 %v168
    %v238 = vpop.f32.mrf.mxu0
    %v239 = vadd.f32 %v159, %v238
    %v240 = vpop.f32.mrf.mxu0
    %241 = vdwg.mxu0
    %v242 = vsub.f32 0.0, %v239
    %v243 = vmul.f32 %v242, 1.442695
    %v244 = vpow.pop %v243
    %v245 = vadd.f32 %v244, 1.0
    %v246 = vrcp.pop %v245
    %v247 = vmul.f32 1.0, %v246
    %v248 = vmul.f32 %v239, %v247
    %v249 = vld [vmem:[%s9] sm:$0xff]
    %v250 = vld [vmem:[%s9 + $0x8] sm:$0xff]
    %v251 = vld [vmem:[%s9 + $0x10] sm:$0xff]
    %v252 = vld [vmem:[%s9 + $0x18] sm:$0xff]
    %v253 = vld [vmem:[%s9 + $0x20] sm:$0xff]
    %v254 = vld [vmem:[%s9 + $0x28] sm:$0xff]
    %v255 = vld [vmem:[%s9 + $0x30] sm:$0xff]
    %v256 = vld [vmem:[%s9 + $0x38] sm:$0xff]
    %v257 = vld [vmem:[%s9 + $0x40] sm:$0xff]
    %v258 = vld [vmem:[%s9 + $0x48] sm:$0xff]
    %v259 = vld [vmem:[%s9 + $0x50] sm:$0xff]
    %v260 = vld [vmem:[%s9 + $0x58] sm:$0xff]
    %v261 = vld [vmem:[%s9 + $0x60] sm:$0xff]
    %v262 = vld [vmem:[%s9 + $0x68] sm:$0xff]
    %v263 = vld [vmem:[%s9 + $0x70] sm:$0xff]
    %v264 = vld [vmem:[%s9 + $0x78] sm:$0xff]
    %v265 = vld [vmem:[#allocation9] sm:$0x1]
    %v267 = vlaneseq
    %v268 = vshrl.u32 %v267, 7
    %v269 = vsub.s32 0, %v268
    %v270 = vrot.slane %v265, %v269
    %272 = vmatprep.subr.mxu0 0.0
    %273 = vmatpush1.msra.mxu0 %v264
    %274 = vmatprep.subr.mxu0 0.0
    %275 = vmatpush1.msra.mxu0 %v263
    %276 = vmatprep.subr.mxu0 0.0
    %277 = vmatpush1.msra.mxu0 %v262
    %278 = vmatprep.subr.mxu0 0.0
    %279 = vmatpush1.msra.mxu0 %v261
    %280 = vmatprep.subr.mxu0 0.0
    %281 = vmatpush1.msra.mxu0 %v260
    %282 = vmatprep.subr.mxu0 0.0
    %283 = vmatpush1.msra.mxu0 %v259
    %284 = vmatprep.subr.mxu0 0.0
    %285 = vmatpush1.msra.mxu0 %v258
    %286 = vmatprep.subr.mxu0 0.0
    %287 = vmatpush1.msra.mxu0 %v257
    %288 = vmatprep.subr.mxu0 0.0
    %289 = vmatpush1.msra.mxu0 %v256
    %290 = vmatprep.subr.mxu0 0.0
    %291 = vmatpush1.msra.mxu0 %v255
    %292 = vmatprep.subr.mxu0 0.0
    %293 = vmatpush1.msra.mxu0 %v254
    %294 = vmatprep.subr.mxu0 0.0
    %295 = vmatpush1.msra.mxu0 %v253
    %296 = vmatprep.subr.mxu0 0.0
    %297 = vmatpush1.msra.mxu0 %v252
    %298 = vmatprep.subr.mxu0 0.0
    %299 = vmatpush1.msra.mxu0 %v251
    %300 = vmatprep.subr.mxu0 0.0
    %301 = vmatpush1.msra.mxu0 %v250
    %302 = vmatprep.subr.mxu0 0.0
    %303 = vmatpush1.msra.mxu0 %v249
    %304 = vmatprep.subr.mxu0 0.0
    %305 = vmatpush2.msra.mxu0 0.0
    %306 = vmatprep.subr.mxu0 0.0
    %307 = vmatpush2.msra.mxu0 0.0
    %308 = vmatprep.subr.mxu0 0.0
    %309 = vmatpush2.msra.mxu0 0.0
    %310 = vmatprep.subr.mxu0 0.0
    %311 = vmatpush2.msra.mxu0 0.0
    %312 = vmatprep.subr.mxu0 0.0
    %313 = vmatpush2.msra.mxu0 0.0
    %314 = vmatprep.subr.mxu0 0.0
    %315 = vmatpush2.msra.mxu0 0.0
    %316 = vmatprep.subr.mxu0 0.0
    %317 = vmatpush2.msra.mxu0 0.0
    %318 = vmatprep.subr.mxu0 0.0
    %319 = vmatpush2.msra.mxu0 0.0
    %320 = vmatprep.subr.mxu0 0.0
    %321 = vmatpush2.msra.mxu0 0.0
    %322 = vmatprep.subr.mxu0 0.0
    %323 = vmatpush2.msra.mxu0 0.0
    %324 = vmatprep.subr.mxu0 0.0
    %325 = vmatpush2.msra.mxu0 0.0
    %326 = vmatprep.subr.mxu0 0.0
    %327 = vmatpush2.msra.mxu0 0.0
    %328 = vmatprep.subr.mxu0 0.0
    %329 = vmatpush2.msra.mxu0 0.0
    %330 = vmatprep.subr.mxu0 0.0
    %331 = vmatpush2.msra.mxu0 0.0
    %332 = vmatprep.subr.mxu0 0.0
    %333 = vmatpush2.msra.mxu0 0.0
    %334 = vmatprep.subr.mxu0 0.0
    %335 = vmatpush2.msra.mxu0 0.0
    %336 = vmatprep.mubr.f32.mxu0 0.0
    %337 = vmatmul.mubr.f32.gmra.mxu0 %v248
    %v338 = vpop.f32.mrf.mxu0
    %v339 = vadd.f32 %v270, %v338
    %v340 = vpop.f32.mrf.mxu0
    %341 = vdwg.mxu0
    %v342 = vld [vmem:[%s6] sm:$0x1]
    %v343 = vlaneseq
    %v344 = vshrl.u32 %v343, 7
    %v345 = vsub.s32 0, %v344
    %v346 = vrot.slane %v342, %v345
    %v347 = vadd.f32 %v339, %v346
    %v348 = vadd.f32 %v339, 1.0
    %v349 = vld [vmem:[%s6 + $0x1] sm:$0x1]
    %v350 = vlaneseq
    %v351 = vshrl.u32 %v350, 7
    %v352 = vsub.s32 0, %v351
    %v353 = vrot.slane %v349, %v352
    %v354 = vadd.f32 %v348, %v353
    %v355 = vld [vmem:[%s2] sm:$0xff]
    %v356 = vld [vmem:[%s2 + $0x8] sm:$0xff]
    %v357 = vld [vmem:[%s2 + $0x10] sm:$0xff]
    %v358 = vld [vmem:[%s2 + $0x18] sm:$0xff]
    %v359 = vld [vmem:[%s2 + $0x20] sm:$0xff]
    %v360 = vld [vmem:[%s2 + $0x28] sm:$0xff]
    %v361 = vld [vmem:[%s2 + $0x30] sm:$0xff]
    %v362 = vld [vmem:[%s2 + $0x38] sm:$0xff]
    %v363 = vld [vmem:[%s2 + $0x40] sm:$0xff]
    %v364 = vld [vmem:[%s2 + $0x48] sm:$0xff]
    %v365 = vld [vmem:[%s2 + $0x50] sm:$0xff]
    %v366 = vld [vmem:[%s2 + $0x58] sm:$0xff]
    %v367 = vld [vmem:[%s2 + $0x60] sm:$0xff]
    %v368 = vld [vmem:[%s2 + $0x68] sm:$0xff]
    %v369 = vld [vmem:[%s2 + $0x70] sm:$0xff]
    %v370 = vld [vmem:[%s2 + $0x78] sm:$0xff]
    %v371 = vld [vmem:[%s3] sm:$0xff]
    %v372 = vld [vmem:[%s3 + $0x8] sm:$0xff]
    %v373 = vld [vmem:[%s3 + $0x10] sm:$0xff]
    %v374 = vld [vmem:[%s3 + $0x18] sm:$0xff]
    %v375 = vld [vmem:[%s3 + $0x20] sm:$0xff]
    %v376 = vld [vmem:[%s3 + $0x28] sm:$0xff]
    %v377 = vld [vmem:[%s3 + $0x30] sm:$0xff]
    %v378 = vld [vmem:[%s3 + $0x38] sm:$0xff]
    %v379 = vld [vmem:[%s3 + $0x40] sm:$0xff]
    %v380 = vld [vmem:[%s3 + $0x48] sm:$0xff]
    %v381 = vld [vmem:[%s3 + $0x50] sm:$0xff]
    %v382 = vld [vmem:[%s3 + $0x58] sm:$0xff]
    %v383 = vld [vmem:[%s3 + $0x60] sm:$0xff]
    %v384 = vld [vmem:[%s3 + $0x68] sm:$0xff]
    %v385 = vld [vmem:[%s3 + $0x70] sm:$0xff]
    %v386 = vld [vmem:[%s3 + $0x78] sm:$0xff]
    %v387 = vsub.f32 %v371, %v355
    %v388 = vsub.f32 %v372, %v356
    %v389 = vsub.f32 %v373, %v357
    %v390 = vsub.f32 %v374, %v358
    %v391 = vsub.f32 %v375, %v359
    %v392 = vsub.f32 %v376, %v360
    %v393 = vsub.f32 %v377, %v361
    %v394 = vsub.f32 %v378, %v362
    %v395 = vsub.f32 %v379, %v363
    %v396 = vsub.f32 %v380, %v364
    %v397 = vsub.f32 %v381, %v365
    %v398 = vsub.f32 %v382, %v366
    %v399 = vsub.f32 %v383, %v367
    %v400 = vsub.f32 %v384, %v368
    %v401 = vsub.f32 %v385, %v369
    %v402 = vsub.f32 %v386, %v370
    %s403 = sld [smem:[#allocation2]]
    %s404 = smul.f32 %s403, 0.001
    %v405 = vstv %s404
    %v406 = vmul.f32 %v405, %v387
    %v407 = vmul.f32 %v405, %v388
    %v408 = vmul.f32 %v405, %v389
    %v409 = vmul.f32 %v405, %v390
    %v410 = vmul.f32 %v405, %v391
    %v411 = vmul.f32 %v405, %v392
    %v412 = vmul.f32 %v405, %v393
    %v413 = vmul.f32 %v405, %v394
    %v414 = vadd.f32 %v355, %v406
    %v415 = vadd.f32 %v356, %v407
    %v416 = vadd.f32 %v357, %v408
    %v417 = vadd.f32 %v358, %v409
    %v418 = vadd.f32 %v359, %v410
    %v419 = vadd.f32 %v360, %v411
    %v420 = vadd.f32 %v361, %v412
    %v421 = vadd.f32 %v362, %v413
    %s422 = sld [smem:[#allocation2 + $0x1]]
    %s423 = smul.f32 %s422, 0.001
    %v424 = vstv %s423
    %v425 = vmul.f32 %v424, %v395
    %v426 = vmul.f32 %v424, %v396
    %v427 = vmul.f32 %v424, %v397
    %v428 = vmul.f32 %v424, %v398
    %v429 = vmul.f32 %v424, %v399
    %v430 = vmul.f32 %v424, %v400
    %v431 = vmul.f32 %v424, %v401
    %v432 = vmul.f32 %v424, %v402
    %v433 = vadd.f32 %v363, %v425
    %v434 = vadd.f32 %v364, %v426
    %v435 = vadd.f32 %v365, %v427
    %v436 = vadd.f32 %v366, %v428
    %v437 = vadd.f32 %v367, %v429
    %v438 = vadd.f32 %v368, %v430
    %v439 = vadd.f32 %v369, %v431
    %v440 = vadd.f32 %v370, %v432
    %v441 = vld [vmem:[#allocation10] sm:$0xff]
    %v442 = vld [vmem:[#allocation10 + $0x8] sm:$0xff]
    %v443 = vld [vmem:[%s4] sm:$0xff]
    %v444 = vld [vmem:[%s4 + $0x8] sm:$0xff]
    %v445 = vld [vmem:[%s4 + $0x10] sm:$0xff]
    %v446 = vld [vmem:[%s4 + $0x18] sm:$0xff]
    %v447 = vld [vmem:[%s4 + $0x20] sm:$0xff]
    %v448 = vld [vmem:[%s4 + $0x28] sm:$0xff]
    %v449 = vld [vmem:[%s4 + $0x30] sm:$0xff]
    %v450 = vld [vmem:[%s4 + $0x38] sm:$0xff]
    %v451 = vld [vmem:[#allocation6] sm:$0x1]
    %v453 = vlaneseq
    %v454 = vshrl.u32 %v453, 7
    %v455 = vsub.s32 0, %v454
    %v456 = vrot.slane %v451, %v455
    %v458 = vadd.f32 %v443, %v456
    %v459 = vadd.f32 %v444, %v456
    %v460 = vadd.f32 %v445, %v456
    %v461 = vadd.f32 %v446, %v456
    %v462 = vadd.f32 %v447, %v456
    %v463 = vadd.f32 %v448, %v456
    %v464 = vadd.f32 %v449, %v456
    %v465 = vadd.f32 %v450, %v456
    %vm466 = vcmask 130048
    %v468 = vsel %vm466, %v414, 0
    %v471 = vsel %vm466, %v415, 0
    %v474 = vsel %vm466, %v416, 0
    %v477 = vsel %vm466, %v417, 0
    %v480 = vsel %vm466, %v418, 0
    %v483 = vsel %vm466, %v419, 0
    %v486 = vsel %vm466, %v420, 0
    %v489 = vsel %vm466, %v421, 0
    %v492 = vsel %vm466, %v433, 0
    %v495 = vsel %vm466, %v434, 0
    %v498 = vsel %vm466, %v435, 0
    %v501 = vsel %vm466, %v436, 0
    %v504 = vsel %vm466, %v437, 0
    %v507 = vsel %vm466, %v438, 0
    %v510 = vsel %vm466, %v439, 0
    %v513 = vsel %vm466, %v440, 0
    %515 = vmatprep.subr.mxu0 0.0
    %516 = vmatpush1.msra.mxu0 0.0
    %517 = vmatprep.subr.mxu0 0.0
    %518 = vmatpush1.msra.mxu0 0.0
    %519 = vmatprep.subr.mxu0 0.0
    %520 = vmatpush1.msra.mxu0 0.0
    %521 = vmatprep.subr.mxu0 0.0
    %522 = vmatpush1.msra.mxu0 0.0
    %523 = vmatprep.subr.mxu0 0.0
    %524 = vmatpush1.msra.mxu0 0.0
    %525 = vmatprep.subr.mxu0 0.0
    %526 = vmatpush1.msra.mxu0 0.0
    %527 = vmatprep.subr.mxu0 0.0
    %528 = vmatpush1.msra.mxu0 0.0
    %529 = vmatprep.subr.mxu0 0.0
    %530 = vmatpush1.msra.mxu0 0.0
    %531 = vmatprep.subr.mxu0 0.0
    %532 = vmatpush1.msra.mxu0 0.0
    %533 = vmatprep.subr.mxu0 0.0
    %534 = vmatpush1.msra.mxu0 0.0
    %535 = vmatprep.subr.mxu0 0.0
    %536 = vmatpush1.msra.mxu0 0.0
    %537 = vmatprep.subr.mxu0 0.0
    %538 = vmatpush1.msra.mxu0 0.0
    %539 = vmatprep.subr.mxu0 0.0
    %540 = vmatpush1.msra.mxu0 0.0
    %541 = vmatprep.subr.mxu0 0.0
    %542 = vmatpush1.msra.mxu0 0.0
    %543 = vmatprep.subr.mxu0 0.0
    %544 = vmatpush1.msra.mxu0 %v442
    %545 = vmatprep.subr.mxu0 0.0
    %546 = vmatpush1.msra.mxu0 %v441
    %547 = vmatprep.subr.mxu0 0.0
    %548 = vmatpush2.msra.mxu0 0.0
    %549 = vmatprep.subr.mxu0 0.0
    %550 = vmatpush2.msra.mxu0 0.0
    %551 = vmatprep.subr.mxu0 0.0
    %552 = vmatpush2.msra.mxu0 0.0
    %553 = vmatprep.subr.mxu0 0.0
    %554 = vmatpush2.msra.mxu0 0.0
    %555 = vmatprep.subr.mxu0 0.0
    %556 = vmatpush2.msra.mxu0 0.0
    %557 = vmatprep.subr.mxu0 0.0
    %558 = vmatpush2.msra.mxu0 0.0
    %559 = vmatprep.subr.mxu0 0.0
    %560 = vmatpush2.msra.mxu0 0.0
    %561 = vmatprep.subr.mxu0 0.0
    %562 = vmatpush2.msra.mxu0 0.0
    %563 = vmatprep.subr.mxu0 0.0
    %564 = vmatpush2.msra.mxu0 0.0
    %565 = vmatprep.subr.mxu0 0.0
    %566 = vmatpush2.msra.mxu0 0.0
    %567 = vmatprep.subr.mxu0 0.0
    %568 = vmatpush2.msra.mxu0 0.0
    %569 = vmatprep.subr.mxu0 0.0
    %570 = vmatpush2.msra.mxu0 0.0
    %571 = vmatprep.subr.mxu0 0.0
    %572 = vmatpush2.msra.mxu0 0.0
    %573 = vmatprep.subr.mxu0 0.0
    %574 = vmatpush2.msra.mxu0 0.0
    %575 = vmatprep.subr.mxu0 0.0
    %576 = vmatpush2.msra.mxu0 0.0
    %577 = vmatprep.subr.mxu0 0.0
    %578 = vmatpush2.msra.mxu0 0.0
    %579 = vmatprep.mubr.f32.mxu0 0.0
    %580 = vmatmul.mubr.f32.gmra.mxu0 %v468
    %v581 = vpop.f32.mrf.mxu0
    %v582 = vadd.f32 %v458, %v581
    %v583 = vpop.f32.mrf.mxu0
    %584 = vmatprep.mubr.f32.mxu0 0.0
    %585 = vmatmul.mubr.f32.gmra.mxu0 %v471
    %v586 = vpop.f32.mrf.mxu0
    %v587 = vadd.f32 %v459, %v586
    %v588 = vpop.f32.mrf.mxu0
    %589 = vmatprep.mubr.f32.mxu0 0.0
    %590 = vmatmul.mubr.f32.gmra.mxu0 %v474
    %v591 = vpop.f32.mrf.mxu0
    %v592 = vadd.f32 %v460, %v591
    %v593 = vpop.f32.mrf.mxu0
    %594 = vmatprep.mubr.f32.mxu0 0.0
    %595 = vmatmul.mubr.f32.gmra.mxu0 %v477
    %v596 = vpop.f32.mrf.mxu0
    %v597 = vadd.f32 %v461, %v596
    %v598 = vpop.f32.mrf.mxu0
    %599 = vmatprep.mubr.f32.mxu0 0.0
    %600 = vmatmul.mubr.f32.gmra.mxu0 %v480
    %v601 = vpop.f32.mrf.mxu0
    %v602 = vadd.f32 %v462, %v601
    %v603 = vpop.f32.mrf.mxu0
    %604 = vmatprep.mubr.f32.mxu0 0.0
    %605 = vmatmul.mubr.f32.gmra.mxu0 %v483
    %v606 = vpop.f32.mrf.mxu0
    %v607 = vadd.f32 %v463, %v606
    %v608 = vpop.f32.mrf.mxu0
    %609 = vmatprep.mubr.f32.mxu0 0.0
    %610 = vmatmul.mubr.f32.gmra.mxu0 %v486
    %v611 = vpop.f32.mrf.mxu0
    %v612 = vadd.f32 %v464, %v611
    %v613 = vpop.f32.mrf.mxu0
    %614 = vmatprep.mubr.f32.mxu0 0.0
    %615 = vmatmul.mubr.f32.gmra.mxu0 %v489
    %v616 = vpop.f32.mrf.mxu0
    %v617 = vadd.f32 %v465, %v616
    %v618 = vpop.f32.mrf.mxu0
    %619 = vmatprep.mubr.f32.mxu0 0.0
    %620 = vmatmul.mubr.f32.gmra.mxu0 %v492
    %v621 = vpop.f32.mrf.mxu0
    %v622 = vadd.f32 %v458, %v621
    %v623 = vpop.f32.mrf.mxu0
    %624 = vmatprep.mubr.f32.mxu0 0.0
    %625 = vmatmul.mubr.f32.gmra.mxu0 %v495
    %v626 = vpop.f32.mrf.mxu0
    %v627 = vadd.f32 %v459, %v626
    %v628 = vpop.f32.mrf.mxu0
    %629 = vmatprep.mubr.f32.mxu0 0.0
    %630 = vmatmul.mubr.f32.gmra.mxu0 %v498
    %v631 = vpop.f32.mrf.mxu0
    %v632 = vadd.f32 %v460, %v631
    %v633 = vpop.f32.mrf.mxu0
    %634 = vmatprep.mubr.f32.mxu0 0.0
    %635 = vmatmul.mubr.f32.gmra.mxu0 %v501
    %v636 = vpop.f32.mrf.mxu0
    %v637 = vadd.f32 %v461, %v636
    %v638 = vpop.f32.mrf.mxu0
    %639 = vmatprep.mubr.f32.mxu0 0.0
    %640 = vmatmul.mubr.f32.gmra.mxu0 %v504
    %v641 = vpop.f32.mrf.mxu0
    %v642 = vadd.f32 %v462, %v641
    %v643 = vpop.f32.mrf.mxu0
    %644 = vmatprep.mubr.f32.mxu0 0.0
    %645 = vmatmul.mubr.f32.gmra.mxu0 %v507
    %v646 = vpop.f32.mrf.mxu0
    %v647 = vadd.f32 %v463, %v646
    %v648 = vpop.f32.mrf.mxu0
    %649 = vmatprep.mubr.f32.mxu0 0.0
    %650 = vmatmul.mubr.f32.gmra.mxu0 %v510
    %v651 = vpop.f32.mrf.mxu0
    %v652 = vadd.f32 %v464, %v651
    %v653 = vpop.f32.mrf.mxu0
    %654 = vmatprep.mubr.f32.mxu0 0.0
    %655 = vmatmul.mubr.f32.gmra.mxu0 %v513
    %v656 = vpop.f32.mrf.mxu0
    %v657 = vadd.f32 %v465, %v656
    %v658 = vpop.f32.mrf.mxu0
    %659 = vdwg.mxu0
    %660 = vadd.xlane.f32.xlu0 %v582
    %v661 = vpop.xlane.xlu0 %660
    %662 = vadd.xlane.f32.xlu0 %v587
    %v663 = vpop.xlane.xlu0 %662
    %664 = vadd.xlane.f32.xlu0 %v592
    %v665 = vpop.xlane.xlu0 %664
    %666 = vadd.xlane.f32.xlu0 %v597
    %v667 = vpop.xlane.xlu0 %666
    %668 = vadd.xlane.f32.xlu0 %v602
    %v669 = vpop.xlane.xlu0 %668
    %670 = vadd.xlane.f32.xlu0 %v607
    %v671 = vpop.xlane.xlu0 %670
    %672 = vadd.xlane.f32.xlu0 %v612
    %v673 = vpop.xlane.xlu0 %672
    %674 = vadd.xlane.f32.xlu0 %v617
    %v675 = vpop.xlane.xlu0 %674
    %676 = vadd.xlane.f32.xlu0 %v622
    %v677 = vpop.xlane.xlu0 %676
    %678 = vadd.xlane.f32.xlu0 %v627
    %v679 = vpop.xlane.xlu0 %678
    %680 = vadd.xlane.f32.xlu0 %v632
    %v681 = vpop.xlane.xlu0 %680
    %682 = vadd.xlane.f32.xlu0 %v637
    %v683 = vpop.xlane.xlu0 %682
    %684 = vadd.xlane.f32.xlu0 %v642
    %v685 = vpop.xlane.xlu0 %684
    %686 = vadd.xlane.f32.xlu0 %v647
    %v687 = vpop.xlane.xlu0 %686
    %688 = vadd.xlane.f32.xlu0 %v652
    %v689 = vpop.xlane.xlu0 %688
    %690 = vadd.xlane.f32.xlu0 %v657
    %v691 = vpop.xlane.xlu0 %690
    %v692 = vrcp.pop 128.0
    %v693 = vmul.f32 %v661, %v692
    %v694 = vmul.f32 %v663, %v692
    %v695 = vmul.f32 %v665, %v692
    %v696 = vmul.f32 %v667, %v692
    %v697 = vmul.f32 %v669, %v692
    %v698 = vmul.f32 %v671, %v692
    %v699 = vmul.f32 %v673, %v692
    %v700 = vmul.f32 %v675, %v692
    %v701 = vmul.f32 %v677, %v692
    %v702 = vmul.f32 %v679, %v692
    %v703 = vmul.f32 %v681, %v692
    %v704 = vmul.f32 %v683, %v692
    %v705 = vmul.f32 %v685, %v692
    %v706 = vmul.f32 %v687, %v692
    %v707 = vmul.f32 %v689, %v692
    %v708 = vmul.f32 %v691, %v692
    %v709 = vmul.f32 %v582, %v582
    %v710 = vmul.f32 %v587, %v587
    %v711 = vmul.f32 %v592, %v592
    %v712 = vmul.f32 %v597, %v597
    %v713 = vmul.f32 %v602, %v602
    %v714 = vmul.f32 %v607, %v607
    %v715 = vmul.f32 %v612, %v612
    %v716 = vmul.f32 %v617, %v617
    %v717 = vmul.f32 %v622, %v622
    %v718 = vmul.f32 %v627, %v627
    %v719 = vmul.f32 %v632, %v632
    %v720 = vmul.f32 %v637, %v637
    %v721 = vmul.f32 %v642, %v642
    %v722 = vmul.f32 %v647, %v647
    %v723 = vmul.f32 %v652, %v652
    %v724 = vmul.f32 %v657, %v657
    %725 = vadd.xlane.f32.xlu0 %v709
    %v726 = vpop.xlane.xlu0 %725
    %727 = vadd.xlane.f32.xlu0 %v710
    %v728 = vpop.xlane.xlu0 %727
    %729 = vadd.xlane.f32.xlu0 %v711
    %v730 = vpop.xlane.xlu0 %729
    %731 = vadd.xlane.f32.xlu0 %v712
    %v732 = vpop.xlane.xlu0 %731
    %733 = vadd.xlane.f32.xlu0 %v713
    %v734 = vpop.xlane.xlu0 %733
    %735 = vadd.xlane.f32.xlu0 %v714
    %v736 = vpop.xlane.xlu0 %735
    %737 = vadd.xlane.f32.xlu0 %v715
    %v738 = vpop.xlane.xlu0 %737
    %739 = vadd.xlane.f32.xlu0 %v716
    %v740 = vpop.xlane.xlu0 %739
    %741 = vadd.xlane.f32.xlu0 %v717
    %v742 = vpop.xlane.xlu0 %741
    %743 = vadd.xlane.f32.xlu0 %v718
    %v744 = vpop.xlane.xlu0 %743
    %745 = vadd.xlane.f32.xlu0 %v719
    %v746 = vpop.xlane.xlu0 %745
    %747 = vadd.xlane.f32.xlu0 %v720
    %v748 = vpop.xlane.xlu0 %747
    %749 = vadd.xlane.f32.xlu0 %v721
    %v750 = vpop.xlane.xlu0 %749
    %751 = vadd.xlane.f32.xlu0 %v722
    %v752 = vpop.xlane.xlu0 %751
    %753 = vadd.xlane.f32.xlu0 %v723
    %v754 = vpop.xlane.xlu0 %753
    %755 = vadd.xlane.f32.xlu0 %v724
    %v756 = vpop.xlane.xlu0 %755
    %v757 = vmul.f32 %v726, %v692
    %v758 = vmul.f32 %v728, %v692
    %v759 = vmul.f32 %v730, %v692
    %v760 = vmul.f32 %v732, %v692
    %v761 = vmul.f32 %v734, %v692
    %v762 = vmul.f32 %v736, %v692
    %v763 = vmul.f32 %v738, %v692
    %v764 = vmul.f32 %v740, %v692
    %v765 = vmul.f32 %v742, %v692
    %v766 = vmul.f32 %v744, %v692
    %v767 = vmul.f32 %v746, %v692
    %v768 = vmul.f32 %v748, %v692
    %v769 = vmul.f32 %v750, %v692
    %v770 = vmul.f32 %v752, %v692
    %v771 = vmul.f32 %v754, %v692
    %v772 = vmul.f32 %v756, %v692
    %v773 = vmul.f32 %v693, %v693
    %v774 = vmul.f32 %v694, %v694
    %v775 = vmul.f32 %v695, %v695
    %v776 = vmul.f32 %v696, %v696
    %v777 = vmul.f32 %v697, %v697
    %v778 = vmul.f32 %v698, %v698
    %v779 = vmul.f32 %v699, %v699
    %v780 = vmul.f32 %v700, %v700
    %v781 = vmul.f32 %v701, %v701
    %v782 = vmul.f32 %v702, %v702
    %v783 = vmul.f32 %v703, %v703
    %v784 = vmul.f32 %v704, %v704
    %v785 = vmul.f32 %v705, %v705
    %v786 = vmul.f32 %v706, %v706
    %v787 = vmul.f32 %v707, %v707
    %v788 = vmul.f32 %v708, %v708
    %v789 = vsub.f32 %v757, %v773
    %v790 = vsub.f32 %v758, %v774
    %v791 = vsub.f32 %v759, %v775
    %v792 = vsub.f32 %v760, %v776
    %v793 = vsub.f32 %v761, %v777
    %v794 = vsub.f32 %v762, %v778
    %v795 = vsub.f32 %v763, %v779
    %v796 = vsub.f32 %v764, %v780
    %v797 = vsub.f32 %v765, %v781
    %v798 = vsub.f32 %v766, %v782
    %v799 = vsub.f32 %v767, %v783
    %v800 = vsub.f32 %v768, %v784
    %v801 = vsub.f32 %v769, %v785
    %v802 = vsub.f32 %v770, %v786
    %v803 = vsub.f32 %v771, %v787
    %v804 = vsub.f32 %v772, %v788
    %v805 = vsub.f32 %v582, %v693
    %v806 = vsub.f32 %v587, %v694
    %v807 = vsub.f32 %v592, %v695
    %v808 = vsub.f32 %v597, %v696
    %v809 = vsub.f32 %v602, %v697
    %v810 = vsub.f32 %v607, %v698
    %v811 = vsub.f32 %v612, %v699
    %v812 = vsub.f32 %v617, %v700
    %v813 = vsub.f32 %v622, %v701
    %v814 = vsub.f32 %v627, %v702
    %v815 = vsub.f32 %v632, %v703
    %v816 = vsub.f32 %v637, %v704
    %v817 = vsub.f32 %v642, %v705
    %v818 = vsub.f32 %v647, %v706
    %v819 = vsub.f32 %v652, %v707
    %v820 = vsub.f32 %v657, %v708
    %v821 = vadd.f32 %v789, 1e-06
    %v822 = vadd.f32 %v790, 1e-06
    %v823 = vadd.f32 %v791, 1e-06
    %v824 = vadd.f32 %v792, 1e-06
    %v825 = vadd.f32 %v793, 1e-06
    %v826 = vadd.f32 %v794, 1e-06
    %v827 = vadd.f32 %v795, 1e-06
    %v828 = vadd.f32 %v796, 1e-06
    %v829 = vadd.f32 %v797, 1e-06
    %v830 = vadd.f32 %v798, 1e-06
    %v831 = vadd.f32 %v799, 1e-06
    %v832 = vadd.f32 %v800, 1e-06
    %v833 = vadd.f32 %v801, 1e-06
    %v834 = vadd.f32 %v802, 1e-06
    %v835 = vadd.f32 %v803, 1e-06
    %v836 = vadd.f32 %v804, 1e-06
    %v837 = vrsqrt.pop %v821
    %v838 = vrsqrt.pop %v822
    %v839 = vrsqrt.pop %v823
    %v840 = vrsqrt.pop %v824
    %v841 = vrsqrt.pop %v825
    %v842 = vrsqrt.pop %v826
    %v843 = vrsqrt.pop %v827
    %v844 = vrsqrt.pop %v828
    %v845 = vrsqrt.pop %v829
    %v846 = vrsqrt.pop %v830
    %v847 = vrsqrt.pop %v831
    %v848 = vrsqrt.pop %v832
    %v849 = vrsqrt.pop %v833
    %v850 = vrsqrt.pop %v834
    %v851 = vrsqrt.pop %v835
    %v852 = vrsqrt.pop %v836
    %v853 = vmul.f32 %v805, %v837
    %v854 = vmul.f32 %v806, %v838
    %v855 = vmul.f32 %v807, %v839
    %v856 = vmul.f32 %v808, %v840
    %v857 = vmul.f32 %v809, %v841
    %v858 = vmul.f32 %v810, %v842
    %v859 = vmul.f32 %v811, %v843
    %v860 = vmul.f32 %v812, %v844
    %v861 = vmul.f32 %v813, %v845
    %v862 = vmul.f32 %v814, %v846
    %v863 = vmul.f32 %v815, %v847
    %v864 = vmul.f32 %v816, %v848
    %v865 = vmul.f32 %v817, %v849
    %v866 = vmul.f32 %v818, %v850
    %v867 = vmul.f32 %v819, %v851
    %v868 = vmul.f32 %v820, %v852
    %v869 = vlaneseq
    %v870 = vshrl.u32 %v869, 7
    %v871 = vsub.s32 0, %v870
    %v872 = vrot.slane %v354, %v871
    %v873 = vmul.f32 %v853, %v872
    %v874 = vmul.f32 %v854, %v872
    %v875 = vmul.f32 %v855, %v872
    %v876 = vmul.f32 %v856, %v872
    %v877 = vmul.f32 %v857, %v872
    %v878 = vmul.f32 %v858, %v872
    %v879 = vmul.f32 %v859, %v872
    %v880 = vmul.f32 %v860, %v872
    %v881 = vlaneseq
    %v882 = vshrl.u32 %v881, 7
    %v883 = vsub.s32 0, %v882
    %v884 = vrot.slane %v347, %v883
    %v885 = vadd.f32 %v873, %v884
    %v886 = vadd.f32 %v874, %v884
    %v887 = vadd.f32 %v875, %v884
    %v888 = vadd.f32 %v876, %v884
    %v889 = vadd.f32 %v877, %v884
    %v890 = vadd.f32 %v878, %v884
    %v891 = vadd.f32 %v879, %v884
    %v892 = vadd.f32 %v880, %v884
    %v893 = vlaneseq
    %v894 = vshrl.u32 %v893, 7
    %v895 = vsub.s32 1, %v894
    %v896 = vrot.slane %v354, %v895
    %v897 = vmul.f32 %v861, %v896
    %v898 = vmul.f32 %v862, %v896
    %v899 = vmul.f32 %v863, %v896
    %v900 = vmul.f32 %v864, %v896
    %v901 = vmul.f32 %v865, %v896
    %v902 = vmul.f32 %v866, %v896
    %v903 = vmul.f32 %v867, %v896
    %v904 = vmul.f32 %v868, %v896
    %v905 = vlaneseq
    %v906 = vshrl.u32 %v905, 7
    %v907 = vsub.s32 1, %v906
    %v908 = vrot.slane %v347, %v907
    %v909 = vadd.f32 %v897, %v908
    %v910 = vadd.f32 %v898, %v908
    %v911 = vadd.f32 %v899, %v908
    %v912 = vadd.f32 %v900, %v908
    %v913 = vadd.f32 %v901, %v908
    %v914 = vadd.f32 %v902, %v908
    %v915 = vadd.f32 %v903, %v908
    %v916 = vadd.f32 %v904, %v908
    %v917 = vld [vmem:[%s12] sm:$0xff]
    %v918 = vld [vmem:[%s12 + $0x8] sm:$0xff]
    %v919 = vld [vmem:[%s12 + $0x10] sm:$0xff]
    %v920 = vld [vmem:[%s12 + $0x18] sm:$0xff]
    %v921 = vld [vmem:[%s12 + $0x20] sm:$0xff]
    %v922 = vld [vmem:[%s12 + $0x28] sm:$0xff]
    %v923 = vld [vmem:[%s12 + $0x30] sm:$0xff]
    %v924 = vld [vmem:[%s12 + $0x38] sm:$0xff]
    %v925 = vld [vmem:[%s12 + $0x40] sm:$0xff]
    %v926 = vld [vmem:[%s12 + $0x48] sm:$0xff]
    %v927 = vld [vmem:[%s12 + $0x50] sm:$0xff]
    %v928 = vld [vmem:[%s12 + $0x58] sm:$0xff]
    %v929 = vld [vmem:[%s12 + $0x60] sm:$0xff]
    %v930 = vld [vmem:[%s12 + $0x68] sm:$0xff]
    %v931 = vld [vmem:[%s12 + $0x70] sm:$0xff]
    %v932 = vld [vmem:[%s12 + $0x78] sm:$0xff]
    %v933 = vld [vmem:[#allocation12] sm:$0x1]
    %v935 = vlaneseq
    %v936 = vshrl.u32 %v935, 7
    %v937 = vsub.s32 0, %v936
    %v938 = vrot.slane %v933, %v937
    %940 = vmatprep.subr.mxu0 0.0
    %941 = vmatpush1.msra.mxu0 %v932
    %942 = vmatprep.subr.mxu0 0.0
    %943 = vmatpush1.msra.mxu0 %v931
    %944 = vmatprep.subr.mxu0 0.0
    %945 = vmatpush1.msra.mxu0 %v930
    %946 = vmatprep.subr.mxu0 0.0
    %947 = vmatpush1.msra.mxu0 %v929
    %948 = vmatprep.subr.mxu0 0.0
    %949 = vmatpush1.msra.mxu0 %v928
    %950 = vmatprep.subr.mxu0 0.0
    %951 = vmatpush1.msra.mxu0 %v927
    %952 = vmatprep.subr.mxu0 0.0
    %953 = vmatpush1.msra.mxu0 %v926
    %954 = vmatprep.subr.mxu0 0.0
    %955 = vmatpush1.msra.mxu0 %v925
    %956 = vmatprep.subr.mxu0 0.0
    %957 = vmatpush1.msra.mxu0 %v924
    %958 = vmatprep.subr.mxu0 0.0
    %959 = vmatpush1.msra.mxu0 %v923
    %960 = vmatprep.subr.mxu0 0.0
    %961 = vmatpush1.msra.mxu0 %v922
    %962 = vmatprep.subr.mxu0 0.0
    %963 = vmatpush1.msra.mxu0 %v921
    %964 = vmatprep.subr.mxu0 0.0
    %965 = vmatpush1.msra.mxu0 %v920
    %966 = vmatprep.subr.mxu0 0.0
    %967 = vmatpush1.msra.mxu0 %v919
    %968 = vmatprep.subr.mxu0 0.0
    %969 = vmatpush1.msra.mxu0 %v918
    %970 = vmatprep.subr.mxu0 0.0
    %971 = vmatpush1.msra.mxu0 %v917
    %972 = vmatprep.subr.mxu0 0.0
    %973 = vmatpush2.msra.mxu0 0.0
    %974 = vmatprep.subr.mxu0 0.0
    %975 = vmatpush2.msra.mxu0 0.0
    %976 = vmatprep.subr.mxu0 0.0
    %977 = vmatpush2.msra.mxu0 0.0
    %978 = vmatprep.subr.mxu0 0.0
    %979 = vmatpush2.msra.mxu0 0.0
    %980 = vmatprep.subr.mxu0 0.0
    %981 = vmatpush2.msra.mxu0 0.0
    %982 = vmatprep.subr.mxu0 0.0
    %983 = vmatpush2.msra.mxu0 0.0
    %984 = vmatprep.subr.mxu0 0.0
    %985 = vmatpush2.msra.mxu0 0.0
    %986 = vmatprep.subr.mxu0 0.0
    %987 = vmatpush2.msra.mxu0 0.0
    %988 = vmatprep.subr.mxu0 0.0
    %989 = vmatpush2.msra.mxu0 0.0
    %990 = vmatprep.subr.mxu0 0.0
    %991 = vmatpush2.msra.mxu0 0.0
    %992 = vmatprep.subr.mxu0 0.0
    %993 = vmatpush2.msra.mxu0 0.0
    %994 = vmatprep.subr.mxu0 0.0
    %995 = vmatpush2.msra.mxu0 0.0
    %996 = vmatprep.subr.mxu0 0.0
    %997 = vmatpush2.msra.mxu0 0.0
    %998 = vmatprep.subr.mxu0 0.0
    %999 = vmatpush2.msra.mxu0 0.0
    %1000 = vmatprep.subr.mxu0 0.0
    %1001 = vmatpush2.msra.mxu0 0.0
    %1002 = vmatprep.subr.mxu0 0.0
    %1003 = vmatpush2.msra.mxu0 0.0
    %1004 = vmatprep.mubr.f32.mxu0 0.0
    %1005 = vmatmul.mubr.f32.gmra.mxu0 %v885
    %v1006 = vpop.f32.mrf.mxu0
    %v1007 = vadd.f32 %v938, %v1006
    %v1008 = vpop.f32.mrf.mxu0
    %1009 = vmatprep.mubr.f32.mxu0 0.0
    %1010 = vmatmul.mubr.f32.gmra.mxu0 %v886
    %v1011 = vpop.f32.mrf.mxu0
    %v1012 = vadd.f32 %v938, %v1011
    %v1013 = vpop.f32.mrf.mxu0
    %1014 = vmatprep.mubr.f32.mxu0 0.0
    %1015 = vmatmul.mubr.f32.gmra.mxu0 %v887
    %v1016 = vpop.f32.mrf.mxu0
    %v1017 = vadd.f32 %v938, %v1016
    %v1018 = vpop.f32.mrf.mxu0
    %1019 = vmatprep.mubr.f32.mxu0 0.0
    %1020 = vmatmul.mubr.f32.gmra.mxu0 %v888
    %v1021 = vpop.f32.mrf.mxu0
    %v1022 = vadd.f32 %v938, %v1021
    %v1023 = vpop.f32.mrf.mxu0
    %1024 = vmatprep.mubr.f32.mxu0 0.0
    %1025 = vmatmul.mubr.f32.gmra.mxu0 %v889
    %v1026 = vpop.f32.mrf.mxu0
    %v1027 = vadd.f32 %v938, %v1026
    %v1028 = vpop.f32.mrf.mxu0
    %1029 = vmatprep.mubr.f32.mxu0 0.0
    %1030 = vmatmul.mubr.f32.gmra.mxu0 %v890
    %v1031 = vpop.f32.mrf.mxu0
    %v1032 = vadd.f32 %v938, %v1031
    %v1033 = vpop.f32.mrf.mxu0
    %1034 = vmatprep.mubr.f32.mxu0 0.0
    %1035 = vmatmul.mubr.f32.gmra.mxu0 %v891
    %v1036 = vpop.f32.mrf.mxu0
    %v1037 = vadd.f32 %v938, %v1036
    %v1038 = vpop.f32.mrf.mxu0
    %1039 = vmatprep.mubr.f32.mxu0 0.0
    %1040 = vmatmul.mubr.f32.gmra.mxu0 %v892
    %v1041 = vpop.f32.mrf.mxu0
    %v1042 = vadd.f32 %v938, %v1041
    %v1043 = vpop.f32.mrf.mxu0
    %1044 = vmatprep.mubr.f32.mxu0 0.0
    %1045 = vmatmul.mubr.f32.gmra.mxu0 %v909
    %v1046 = vpop.f32.mrf.mxu0
    %v1047 = vadd.f32 %v938, %v1046
    %v1048 = vpop.f32.mrf.mxu0
    %1049 = vmatprep.mubr.f32.mxu0 0.0
    %1050 = vmatmul.mubr.f32.gmra.mxu0 %v910
    %v1051 = vpop.f32.mrf.mxu0
    %v1052 = vadd.f32 %v938, %v1051
    %v1053 = vpop.f32.mrf.mxu0
    %1054 = vmatprep.mubr.f32.mxu0 0.0
    %1055 = vmatmul.mubr.f32.gmra.mxu0 %v911
    %v1056 = vpop.f32.mrf.mxu0
    %v1057 = vadd.f32 %v938, %v1056
    %v1058 = vpop.f32.mrf.mxu0
    %1059 = vmatprep.mubr.f32.mxu0 0.0
    %1060 = vmatmul.mubr.f32.gmra.mxu0 %v912
    %v1061 = vpop.f32.mrf.mxu0
    %v1062 = vadd.f32 %v938, %v1061
    %v1063 = vpop.f32.mrf.mxu0
    %1064 = vmatprep.mubr.f32.mxu0 0.0
    %1065 = vmatmul.mubr.f32.gmra.mxu0 %v913
    %v1066 = vpop.f32.mrf.mxu0
    %v1067 = vadd.f32 %v938, %v1066
    %v1068 = vpop.f32.mrf.mxu0
    %1069 = vmatprep.mubr.f32.mxu0 0.0
    %1070 = vmatmul.mubr.f32.gmra.mxu0 %v914
    %v1071 = vpop.f32.mrf.mxu0
    %v1072 = vadd.f32 %v938, %v1071
    %v1073 = vpop.f32.mrf.mxu0
    %1074 = vmatprep.mubr.f32.mxu0 0.0
    %1075 = vmatmul.mubr.f32.gmra.mxu0 %v915
    %v1076 = vpop.f32.mrf.mxu0
    %v1077 = vadd.f32 %v938, %v1076
    %v1078 = vpop.f32.mrf.mxu0
    %1079 = vmatprep.mubr.f32.mxu0 0.0
    %1080 = vmatmul.mubr.f32.gmra.mxu0 %v916
    %v1081 = vpop.f32.mrf.mxu0
    %v1082 = vadd.f32 %v938, %v1081
    %v1083 = vpop.f32.mrf.mxu0
    %1084 = vdwg.mxu0
    %v1085 = vsub.f32 %v1007, %v387
    %v1086 = vsub.f32 %v1012, %v388
    %v1087 = vsub.f32 %v1017, %v389
    %v1088 = vsub.f32 %v1022, %v390
    %v1089 = vsub.f32 %v1027, %v391
    %v1090 = vsub.f32 %v1032, %v392
    %v1091 = vsub.f32 %v1037, %v393
    %v1092 = vsub.f32 %v1042, %v394
    %v1093 = vsub.f32 %v1047, %v395
    %v1094 = vsub.f32 %v1052, %v396
    %v1095 = vsub.f32 %v1057, %v397
    %v1096 = vsub.f32 %v1062, %v398
    %v1097 = vsub.f32 %v1067, %v399
    %v1098 = vsub.f32 %v1072, %v400
    %v1099 = vsub.f32 %v1077, %v401
    %v1100 = vsub.f32 %v1082, %v402
    %v1101 = vmul.f32 %v1085, %v1085
    %v1102 = vmul.f32 %v1086, %v1086
    %v1103 = vmul.f32 %v1087, %v1087
    %v1104 = vmul.f32 %v1088, %v1088
    %v1105 = vmul.f32 %v1089, %v1089
    %v1106 = vmul.f32 %v1090, %v1090
    %v1107 = vmul.f32 %v1091, %v1091
    %v1108 = vmul.f32 %v1092, %v1092
    %v1109 = vmul.f32 %v1093, %v1093
    %v1110 = vmul.f32 %v1094, %v1094
    %v1111 = vmul.f32 %v1095, %v1095
    %v1112 = vmul.f32 %v1096, %v1096
    %v1113 = vmul.f32 %v1097, %v1097
    %v1114 = vmul.f32 %v1098, %v1098
    %v1115 = vmul.f32 %v1099, %v1099
    %v1116 = vmul.f32 %v1100, %v1100
    %v1117 = vsel %vm466, %v1101, 0.0
    %v1118 = vsel %vm466, %v1102, 0.0
    %v1119 = vadd.f32 %v1117, %v1118
    %v1120 = vsel %vm466, %v1103, 0.0
    %v1121 = vadd.f32 %v1119, %v1120
    %v1122 = vsel %vm466, %v1104, 0.0
    %v1123 = vadd.f32 %v1121, %v1122
    %v1124 = vsel %vm466, %v1105, 0.0
    %v1125 = vadd.f32 %v1123, %v1124
    %v1126 = vsel %vm466, %v1106, 0.0
    %v1127 = vadd.f32 %v1125, %v1126
    %v1128 = vsel %vm466, %v1107, 0.0
    %v1129 = vadd.f32 %v1127, %v1128
    %v1130 = vsel %vm466, %v1108, 0.0
    %v1131 = vadd.f32 %v1129, %v1130
    %v1132 = vsel %vm466, %v1109, 0.0
    %v1133 = vadd.f32 %v1131, %v1132
    %v1134 = vsel %vm466, %v1110, 0.0
    %v1135 = vadd.f32 %v1133, %v1134
    %v1136 = vsel %vm466, %v1111, 0.0
    %v1137 = vadd.f32 %v1135, %v1136
    %v1138 = vsel %vm466, %v1112, 0.0
    %v1139 = vadd.f32 %v1137, %v1138
    %v1140 = vsel %vm466, %v1113, 0.0
    %v1141 = vadd.f32 %v1139, %v1140
    %v1142 = vsel %vm466, %v1114, 0.0
    %v1143 = vadd.f32 %v1141, %v1142
    %v1144 = vsel %vm466, %v1115, 0.0
    %v1145 = vadd.f32 %v1143, %v1144
    %v1146 = vsel %vm466, %v1116, 0.0
    %v1147 = vadd.f32 %v1145, %v1146
    %1148 = vadd.xlane.f32.xlu0 %v1147
    %v1149 = vpop.xlane.xlu0 %1148
    %v1150 = vrot.slane %v1149, 4
    %v1151 = vadd.f32 %v1149, %v1150
    %v1152 = vrot.slane %v1151, 2
    %v1153 = vadd.f32 %v1151, %v1152
    %v1154 = vrot.slane %v1153, 1
    %v1155 = vadd.f32 %v1153, %v1154
    %s1156 = vtos %v1155
    %v1157 = vstv %s1156
    %v1158 = vmul.f32 %v1157, 0.00048828125
    %vm1159 = vcmask 0
    %1160 = vst.msk [vmem:[#allocation13] sm:$0x1] %vm1159, %v1158
    // Predicated region
    $region82: #{diffdecoder_loss.1} parent=1 // pred_check
      _
    $region83: #{diffdecoder_loss.1} parent=1 // pred_check_branch
      %1162 = sbr.rel (0) target = $region85
    $region84: #{diffdecoder_loss.1} parent=1 // pred_region
      %s1164 = ssub.s32 16, 16
      %1165 = vsyncadd [#allocation4], %s1164
      %s1167 = sshll.u32 [#allocation13], 4
      %s1168 = int_to_ptr.vmem [resolvable:$true] %s1167
      %1170 = dma.vmem_to_hbm [thread:$0]  %s1168, 16, %s14, [#allocation4]
    $region85: #{diffdecoder_loss.1} parent=1 // pred_fallthru
      _
    // Predicated region
    $region86: #{diffdecoder_loss.1} parent=1 // pred_check
      _
    $region87: #{diffdecoder_loss.1} parent=1 // pred_check_branch
      %1172 = sbr.rel (0) target = $region89
    $region88: #{diffdecoder_loss.1} parent=1 // pred_region
      %1173 = dma.done [#allocation4], 16
    $region89: #{diffdecoder_loss.1} parent=1 // pred_fallthru
      _
    %1174 = vsyncpa [#allocation3], 1
    %1175 = vsyncpa [#allocation8], 1
    %1176 = vsyncpa [#allocation11], 1
    %1177 = vsyncpa [#allocation4], 1
    %1178 = vsyncpa [#allocation5], 1

</llo_original>
